<compile_context>
chip_gen: v6e
topology: v6e:2x2x1
jax: 0.10.0
libtpu: 0.0.40
codegen_flags: <defaults>
</compile_context>

<pallas_src>
import functools

import jax
import jax.numpy as jnp
from jax import lax
from jax.experimental import pallas as pl
from jax.experimental.pallas import tpu as pltpu


def _round_up(x, m):
    return -(-x // m) * m


def _seq2seq_kernel(tok_ref, w1_ref, b1_ref, w2_ref, b2_ref,
                    wdec_ref, bdec_ref, out_ref, *, hidden, vocab):
    """One batch tile: fused embedding+gates matmul, 2 LSTM cells (1 step), Linear+Sigmoid."""
    H = hidden

    # One-hot gather on the MXU: (TB, vocab) @ fused_w1 (vocab, 3H) == em @ W1.
    tok = tok_ref[...]                                                   # (TB, 1) int32
    col = lax.broadcasted_iota(jnp.int32, (tok.shape[0], vocab), 1)      # (TB, vocab)
    one_hot = (tok == col).astype(jnp.float32)

    def lstm_cell(gates):
        # Gate columns are pre-permuted to [i | o | g] with i/o pre-scaled by 0.5,
        # so a single tanh over the full 3H slice yields:
        #   tanh(0.5*x_i), tanh(0.5*x_o)  ->  sigmoid via 0.5*t + 0.5
        #   tanh(x_g)                      ->  g directly
        t = jnp.tanh(gates)                          # one EUP pass over 3H lanes
        io = 0.5 * t[:, :2 * H] + 0.5                # sigmoid(i), sigmoid(o)
        i = io[:, :H]
        o = io[:, H:]
        g = t[:, 2 * H:]
        c = i * g                                    # f * c_prev == 0 (zero init state)
        return o * jnp.tanh(c)

    gates1 = jnp.dot(one_hot, w1_ref[...], preferred_element_type=jnp.float32) + b1_ref[...]
    h1 = lstm_cell(gates1)

    gates2 = jnp.dot(h1, w2_ref[...], preferred_element_type=jnp.float32) + b2_ref[...]
    h2 = lstm_cell(gates2)

    # Decode weights/bias are pre-scaled by 0.5 and zero-padded to 128 lanes:
    # sigmoid(z) = 0.5*tanh(0.5*z) + 0.5.
    half_logits = jnp.dot(h2, wdec_ref[...], preferred_element_type=jnp.float32) + bdec_ref[...]
    out_ref[...] = 0.5 * jnp.tanh(half_logits) + 0.5


def _prep_gate_weights(w_ih, b_ih, b_hh, H):
    """PyTorch row blocks [i|f|g|o] -> transposed columns [i|o|g] (f dropped),
    biases combined, and the 0.5 sigmoid-via-tanh pre-scale folded into i/o columns."""
    wT = w_ih.T.astype(jnp.float32)                                       # (in, 4H)
    w_i, w_g, w_o = wT[:, 0:H], wT[:, 2 * H:3 * H], wT[:, 3 * H:4 * H]
    b = (b_ih + b_hh).astype(jnp.float32)
    b_i, b_g, b_o = b[0:H], b[2 * H:3 * H], b[3 * H:4 * H]
    w = jnp.concatenate([0.5 * w_i, 0.5 * w_o, w_g], axis=1)              # (in, 3H)
    bias = jnp.concatenate([0.5 * b_i, 0.5 * b_o, b_g]).reshape(1, 3 * H)
    return w, bias


def _num_tensorcores_per_chip():
    """2 TensorCores per chip only on v7x; v5e/v6e are single-TC."""
    try:
        kind = jax.devices()[0].device_kind.lower()
    except Exception:
        return 1
    return 2 if "v7" in kind else 1


def _pick_tile_b(batch, num_tc, target=2048):
    """Multiple-of-8 batch tile. On 1-TC chips (v5e/v6e) a single large tile when it
    fits (the grid is a serial loop there, extra steps are pure overhead). On v7x,
    split only when each tile can still be >= 256 rows, so both TCs stay busy without
    degenerate tiles."""
    b8 = _round_up(batch, 8)
    if num_tc >= 2 and b8 >= 512:
        return min(target, _round_up(-(-b8 // 2), 8))
    return min(target, b8)


def seq_to_seq_forward(x_tokens, params, *, tile_b=None):
    emb = params["encode.weight"].astype(jnp.float32)         # (L, E)
    L, E = emb.shape
    H = E
    B = x_tokens.shape[0]

    w1, b1 = _prep_gate_weights(params["lstm.weight_ih_l0"],
                                params["lstm.bias_ih_l0"], params["lstm.bias_hh_l0"], H)
    w2, b2 = _prep_gate_weights(params["lstm.weight_ih_l1"],
                                params["lstm.bias_ih_l1"], params["lstm.bias_hh_l1"], H)

    # Fold the embedding table into the layer-0 gate weights (exact up to f32 reassoc).
    w1_fused = jnp.dot(emb, w1, preferred_element_type=jnp.float32)       # (L, 3H)

    # Lane-dense decode: zero-pad output columns to a multiple of 128 and fold the
    # sigmoid 0.5 pre-scale into the weights/bias.
    Lp = _round_up(L, 128)
    w_dec = jnp.zeros((H, Lp), jnp.float32).at[:, :L].set(
        0.5 * params["decode.0.weight"].T.astype(jnp.float32))
    b_dec = jnp.zeros((1, Lp), jnp.float32).at[0, :L].set(
        0.5 * params["decode.0.bias"].astype(jnp.float32))

    if tile_b is None:
        tile_b = _pick_tile_b(B, _num_tensorcores_per_chip())
    tile_b = max(8, (tile_b // 8) * 8)

    # Pad batch to a multiple of the tile; only int32 token ids stream through HBM.
    B_pad = _round_up(B, tile_b)
    tok = jnp.pad(x_tokens.astype(jnp.int32).reshape(B, 1), ((0, B_pad - B), (0, 0)))

    weight_bytes = 4 * (w1_fused.size + b1.size + w2.size + b2.size + w_dec.size + b_dec.size)
    cost = pl.CostEstimate(
        flops=2 * B_pad * (L * 3 * H + H * 3 * H + H * Lp),
        transcendentals=B_pad * (2 * (3 * H + H) + Lp),
        bytes_accessed=4 * B_pad + 4 * B_pad * Lp + weight_bytes,
    )

    out = pl.pallas_call(
        functools.partial(_seq2seq_kernel, hidden=H, vocab=L),
        out_shape=jax.ShapeDtypeStruct((B_pad, Lp), jnp.float32),
        grid_spec=pltpu.PrefetchScalarGridSpec(
            num_scalar_prefetch=0,
            grid=(B_pad // tile_b,),
            in_specs=[
                pl.BlockSpec((tile_b, 1), lambda b: (b, 0)),     # token ids (streamed)
                pl.BlockSpec((L, 3 * H), lambda b: (0, 0)),      # emb @ W_ih_l0^T [i|o|g]
                pl.BlockSpec((1, 3 * H), lambda b: (0, 0)),      # l0 bias [i|o|g] (0.5-scaled i/o)
                pl.BlockSpec((H, 3 * H), lambda b: (0, 0)),      # l1 W_ih^T [i|o|g]
                pl.BlockSpec((1, 3 * H), lambda b: (0, 0)),      # l1 bias [i|o|g]
                pl.BlockSpec((H, Lp), lambda b: (0, 0)),         # decode weight^T (0.5-scaled, padded)
                pl.BlockSpec((1, Lp), lambda b: (0, 0)),         # decode bias (0.5-scaled, padded)
            ],
            out_specs=pl.BlockSpec((tile_b, Lp), lambda b: (b, 0)),
        ),
        compiler_params=pltpu.CompilerParams(
            dimension_semantics=("parallel",)),
        cost_estimate=cost,
    )(tok, w1_fused, b1, w2, b2, w_dec, b_dec)
    return out[:B, :L]


def init_params(key, len_token, embedding_size):
    """Deterministic synthetic parameters with the same shapes as the PyTorch module."""
    H = embedding_size
    k = jax.random.split(key, 11)
    s = 1.0 / float(jnp.sqrt(H))

    def u(kk, shape):
        return jax.random.uniform(kk, shape, jnp.float32, -s, s)

    return {
        "encode.weight": jax.random.normal(k[0], (len_token, H), jnp.float32),
        "lstm.weight_ih_l0": u(k[1], (4 * H, H)),
        "lstm.weight_hh_l0": u(k[2], (4 * H, H)),   # contributes 0 (h0 == 0, seq_len == 1)
        "lstm.bias_ih_l0": u(k[3], (4 * H,)),
        "lstm.bias_hh_l0": u(k[4], (4 * H,)),
        "lstm.weight_ih_l1": u(k[5], (4 * H, H)),
        "lstm.weight_hh_l1": u(k[6], (4 * H, H)),   # contributes 0 (h0 == 0, seq_len == 1)
        "lstm.bias_ih_l1": u(k[7], (4 * H,)),
        "lstm.bias_hh_l1": u(k[8], (4 * H,)),
        "decode.0.weight": u(k[9], (len_token, H)),
        "decode.0.bias": u(k[10], (len_token,)),
    }


def reference_forward(x_tokens, params):
    """Pure-JAX reference mirroring PyTorch LSTM math exactly (zero initial states)."""
    em = params["encode.weight"][x_tokens]

    def sig(x):
        return 1.0 / (1.0 + jnp.exp(-x))

    def cell(inp, wih, whh, bih, bhh):
        H = whh.shape[1]
        h0 = jnp.zeros((inp.shape[0], H), jnp.float32)
        c0 = jnp.zeros((inp.shape[0], H), jnp.float32)
        gates = inp @ wih.T + h0 @ whh.T + bih + bhh
        i = sig(gates[:, :H])
        f = sig(gates[:, H:2 * H])
        g = jnp.tanh(gates[:, 2 * H:3 * H])
        o = sig(gates[:, 3 * H:])
        c = f * c0 + i * g
        return o * jnp.tanh(c)

    h1 = cell(em, params["lstm.weight_ih_l0"], params["lstm.weight_hh_l0"],
              params["lstm.bias_ih_l0"], params["lstm.bias_hh_l0"])
    h2 = cell(h1, params["lstm.weight_ih_l1"], params["lstm.weight_hh_l1"],
              params["lstm.bias_ih_l1"], params["lstm.bias_hh_l1"])
    return sig(h2 @ params["decode.0.weight"].T + params["decode.0.bias"])


if __name__ == "__main__":
    len_token, embedding_size = 64, 32
    key = jax.random.PRNGKey(0)
    pkey, xkey1, xkey2 = jax.random.split(key, 3)
    params = init_params(pkey, len_token, embedding_size)

    # Small case matching the module's toy shapes (single grid step).
    x_small = jax.random.randint(xkey1, (8,), 0, len_token, dtype=jnp.int32)
    out_small = jax.block_until_ready(seq_to_seq_forward(x_small, params))
    ref_small = reference_forward(x_small, params)
    assert out_small.shape == (8, len_token), out_small.shape
    assert jnp.allclose(out_small, ref_small, atol=1e-4, rtol=1e-4), \
        float(jnp.max(jnp.abs(out_small - ref_small)))

    # Larger batch exercising padding + the generation-aware tiling policy.
    x_big = jax.random.randint(xkey2, (300,), 0, len_token, dtype=jnp.int32)
    out_big = jax.block_until_ready(seq_to_seq_forward(x_big, params))
    ref_big = reference_forward(x_big, params)
    assert out_big.shape == (300, len_token), out_big.shape
    assert jnp.allclose(out_big, ref_big, atol=1e-4, rtol=1e-4), \
        float(jnp.max(jnp.abs(out_big - ref_big)))

    print("KERNEL_OK")
</pallas_src>

<mosaic_0001>
module attributes {stable_mosaic.version = 11 : i64} {
  func.func @_seq2seq_kernel(%arg0: i32, %arg1: memref<8x1xi32, #tpu.memory_space<vmem>>, %arg2: memref<64x96xf32, #tpu.memory_space<vmem>>, %arg3: memref<1x96xf32, #tpu.memory_space<vmem>>, %arg4: memref<32x96xf32, #tpu.memory_space<vmem>>, %arg5: memref<1x96xf32, #tpu.memory_space<vmem>>, %arg6: memref<32x128xf32, #tpu.memory_space<vmem>>, %arg7: memref<1x128xf32, #tpu.memory_space<vmem>>, %arg8: memref<8x128xf32, #tpu.memory_space<vmem>>) attributes {dimension_semantics = [#tpu.dimension_semantics<parallel>], iteration_bounds = array<i64: 1>, scalar_prefetch = 0 : i64, scratch_operands = 0 : i64, tpu.core_type = #tpu.core_type<tc>, window_params = [{transform_indices = @transform_0, window_bounds = array<i64: 8, 1>}, {pipeline_mode = #tpu.pipeline_mode<synchronous>, transform_indices = @transform_1, window_bounds = array<i64: 64, 96>}, {pipeline_mode = #tpu.pipeline_mode<synchronous>, transform_indices = @transform_2, window_bounds = array<i64: 1, 96>}, {pipeline_mode = #tpu.pipeline_mode<synchronous>, transform_indices = @transform_3, window_bounds = array<i64: 32, 96>}, {pipeline_mode = #tpu.pipeline_mode<synchronous>, transform_indices = @transform_4, window_bounds = array<i64: 1, 96>}, {pipeline_mode = #tpu.pipeline_mode<synchronous>, transform_indices = @transform_5, window_bounds = array<i64: 32, 128>}, {pipeline_mode = #tpu.pipeline_mode<synchronous>, transform_indices = @transform_6, window_bounds = array<i64: 1, 128>}, {transform_indices = @transform_7, window_bounds = array<i64: 8, 128>}]} {
    %c0 = arith.constant 0 : index
    %c0_0 = arith.constant 0 : index
    %0 = vector.load %arg1[%c0, %c0_0] : memref<8x1xi32, #tpu.memory_space<vmem>>, vector<8x1xi32>
    %1 = tpu.iota {dimensions = array<i32: 1>} : vector<8x64xi32>
    %2 = vector.broadcast %0 : vector<8x1xi32> to vector<8x64xi32>
    %3 = arith.cmpi eq, %2, %1 : vector<8x64xi32>
    %4 = arith.extui %3 : vector<8x64xi1> to vector<8x64xi32>
    %5 = arith.sitofp %4 : vector<8x64xi32> to vector<8x64xf32>
    %c0_1 = arith.constant 0 : index
    %c0_2 = arith.constant 0 : index
    %6 = vector.load %arg2[%c0_1, %c0_2] : memref<64x96xf32, #tpu.memory_space<vmem>>, vector<64x96xf32>
    %cst = arith.constant dense<0.000000e+00> : vector<8x96xf32>
    %7 = tpu.matmul %5, %6, %cst {dimension_numbers = #tpu.dot_dimension_numbers<[1], [0], [0], [1], [0, 0, 1, 1], [], []>} : vector<8x64xf32>, vector<64x96xf32>, vector<8x96xf32> -> vector<8x96xf32>
    %c0_3 = arith.constant 0 : index
    %c0_4 = arith.constant 0 : index
    %8 = vector.load %arg3[%c0_3, %c0_4] : memref<1x96xf32, #tpu.memory_space<vmem>>, vector<1x96xf32>
    %9 = vector.broadcast %8 : vector<1x96xf32> to vector<8x96xf32>
    %10 = arith.addf %7, %9 : vector<8x96xf32>
    %11 = math.tanh %10 : vector<8x96xf32>
    %12 = vector.extract_strided_slice %11 {offsets = [0, 0], sizes = [8, 64], strides = [1, 1]} : vector<8x96xf32> to vector<8x64xf32>
    %cst_5 = arith.constant 5.000000e-01 : f32
    %13 = vector.broadcast %cst_5 : f32 to vector<8x64xf32>
    %14 = arith.mulf %13, %12 : vector<8x64xf32>
    %cst_6 = arith.constant 5.000000e-01 : f32
    %15 = vector.broadcast %cst_6 : f32 to vector<8x64xf32>
    %16 = arith.addf %14, %15 : vector<8x64xf32>
    %17 = vector.extract_strided_slice %16 {offsets = [0, 0], sizes = [8, 32], strides = [1, 1]} : vector<8x64xf32> to vector<8x32xf32>
    %18 = vector.extract_strided_slice %16 {offsets = [0, 32], sizes = [8, 32], strides = [1, 1]} : vector<8x64xf32> to vector<8x32xf32>
    %19 = vector.extract_strided_slice %11 {offsets = [0, 64], sizes = [8, 32], strides = [1, 1]} : vector<8x96xf32> to vector<8x32xf32>
    %20 = arith.mulf %17, %19 : vector<8x32xf32>
    %21 = math.tanh %20 : vector<8x32xf32>
    %22 = arith.mulf %18, %21 : vector<8x32xf32>
    %c0_7 = arith.constant 0 : index
    %c0_8 = arith.constant 0 : index
    %23 = vector.load %arg4[%c0_7, %c0_8] : memref<32x96xf32, #tpu.memory_space<vmem>>, vector<32x96xf32>
    %cst_9 = arith.constant dense<0.000000e+00> : vector<8x96xf32>
    %24 = tpu.matmul %22, %23, %cst_9 {dimension_numbers = #tpu.dot_dimension_numbers<[1], [0], [0], [1], [0, 0, 1, 1], [], []>} : vector<8x32xf32>, vector<32x96xf32>, vector<8x96xf32> -> vector<8x96xf32>
    %c0_10 = arith.constant 0 : index
    %c0_11 = arith.constant 0 : index
    %25 = vector.load %arg5[%c0_10, %c0_11] : memref<1x96xf32, #tpu.memory_space<vmem>>, vector<1x96xf32>
    %26 = vector.broadcast %25 : vector<1x96xf32> to vector<8x96xf32>
    %27 = arith.addf %24, %26 : vector<8x96xf32>
    %28 = math.tanh %27 : vector<8x96xf32>
    %29 = vector.extract_strided_slice %28 {offsets = [0, 0], sizes = [8, 64], strides = [1, 1]} : vector<8x96xf32> to vector<8x64xf32>
    %cst_12 = arith.constant 5.000000e-01 : f32
    %30 = vector.broadcast %cst_12 : f32 to vector<8x64xf32>
    %31 = arith.mulf %30, %29 : vector<8x64xf32>
    %cst_13 = arith.constant 5.000000e-01 : f32
    %32 = vector.broadcast %cst_13 : f32 to vector<8x64xf32>
    %33 = arith.addf %31, %32 : vector<8x64xf32>
    %34 = vector.extract_strided_slice %33 {offsets = [0, 0], sizes = [8, 32], strides = [1, 1]} : vector<8x64xf32> to vector<8x32xf32>
    %35 = vector.extract_strided_slice %33 {offsets = [0, 32], sizes = [8, 32], strides = [1, 1]} : vector<8x64xf32> to vector<8x32xf32>
    %36 = vector.extract_strided_slice %28 {offsets = [0, 64], sizes = [8, 32], strides = [1, 1]} : vector<8x96xf32> to vector<8x32xf32>
    %37 = arith.mulf %34, %36 : vector<8x32xf32>
    %38 = math.tanh %37 : vector<8x32xf32>
    %39 = arith.mulf %35, %38 : vector<8x32xf32>
    %c0_14 = arith.constant 0 : index
    %c0_15 = arith.constant 0 : index
    %40 = vector.load %arg6[%c0_14, %c0_15] : memref<32x128xf32, #tpu.memory_space<vmem>>, vector<32x128xf32>
    %cst_16 = arith.constant dense<0.000000e+00> : vector<8x128xf32>
    %41 = tpu.matmul %39, %40, %cst_16 {dimension_numbers = #tpu.dot_dimension_numbers<[1], [0], [0], [1], [0, 0, 1, 1], [], []>} : vector<8x32xf32>, vector<32x128xf32>, vector<8x128xf32> -> vector<8x128xf32>
    %c0_17 = arith.constant 0 : index
    %c0_18 = arith.constant 0 : index
    %42 = vector.load %arg7[%c0_17, %c0_18] : memref<1x128xf32, #tpu.memory_space<vmem>>, vector<1x128xf32>
    %43 = vector.broadcast %42 : vector<1x128xf32> to vector<8x128xf32>
    %44 = arith.addf %41, %43 : vector<8x128xf32>
    %45 = math.tanh %44 : vector<8x128xf32>
    %cst_19 = arith.constant 5.000000e-01 : f32
    %46 = vector.broadcast %cst_19 : f32 to vector<8x128xf32>
    %47 = arith.mulf %46, %45 : vector<8x128xf32>
    %cst_20 = arith.constant 5.000000e-01 : f32
    %48 = vector.broadcast %cst_20 : f32 to vector<8x128xf32>
    %49 = arith.addf %47, %48 : vector<8x128xf32>
    %c0_21 = arith.constant 0 : index
    %c0_22 = arith.constant 0 : index
    %50 = vector.load %arg8[%c0_21, %c0_22] : memref<8x128xf32, #tpu.memory_space<vmem>>, vector<8x128xf32>
    tpu.vector_store %arg8[%c0_21, %c0_22], %49 {strides = array<i32>} : memref<8x128xf32, #tpu.memory_space<vmem>>, vector<8x128xf32>,
    return
  }
  func.func @transform_0(%arg0: i32) -> (i32, i32) {
    %c0_i32 = arith.constant 0 : i32
    %c0_i32_0 = arith.constant 0 : i32
    return %arg0, %c0_i32 : i32, i32
  }
  func.func @transform_1(%arg0: i32) -> (i32, i32) {
    %c0_i32 = arith.constant 0 : i32
    %c0_i32_0 = arith.constant 0 : i32
    %c0_i32_1 = arith.constant 0 : i32
    return %c0_i32, %c0_i32_0 : i32, i32
  }
  func.func @transform_2(%arg0: i32) -> (i32, i32) {
    %c0_i32 = arith.constant 0 : i32
    %c0_i32_0 = arith.constant 0 : i32
    %c0_i32_1 = arith.constant 0 : i32
    return %c0_i32, %c0_i32_0 : i32, i32
  }
  func.func @transform_3(%arg0: i32) -> (i32, i32) {
    %c0_i32 = arith.constant 0 : i32
    %c0_i32_0 = arith.constant 0 : i32
    %c0_i32_1 = arith.constant 0 : i32
    return %c0_i32, %c0_i32_0 : i32, i32
  }
  func.func @transform_4(%arg0: i32) -> (i32, i32) {
    %c0_i32 = arith.constant 0 : i32
    %c0_i32_0 = arith.constant 0 : i32
    %c0_i32_1 = arith.constant 0 : i32
    return %c0_i32, %c0_i32_0 : i32, i32
  }
  func.func @transform_5(%arg0: i32) -> (i32, i32) {
    %c0_i32 = arith.constant 0 : i32
    %c0_i32_0 = arith.constant 0 : i32
    %c0_i32_1 = arith.constant 0 : i32
    return %c0_i32, %c0_i32_0 : i32, i32
  }
  func.func @transform_6(%arg0: i32) -> (i32, i32) {
    %c0_i32 = arith.constant 0 : i32
    %c0_i32_0 = arith.constant 0 : i32
    %c0_i32_1 = arith.constant 0 : i32
    return %c0_i32, %c0_i32_0 : i32, i32
  }
  func.func @transform_7(%arg0: i32) -> (i32, i32) {
    %c0_i32 = arith.constant 0 : i32
    %c0_i32_0 = arith.constant 0 : i32
    return %arg0, %c0_i32 : i32, i32
  }
}

</mosaic_0001>

<llo_original>
// kernel: tpu_custom_call.1
$region0: #{tpu_custom_call.1}
  #allocation0 [shape = 'u32[]', space=smem, size = 0x4, offset = 0x4, fixed_abs, tag = 'smem constant byte address 0x4 - core index']
  #allocation1 [shape = 'u32[144,128]{1,0:T(1,128)}', space=vmem, size = 0x12000, scoped, tag = 'internal scratch']
  %s0 = inlined_call_operand.vmem [shape: s32[8,1], index: 0, kind: input, shape index: {}]
  %s1 = inlined_call_operand.hbm [shape: f32[64,96], index: 1, kind: input, shape index: {}]
  %s2 = inlined_call_operand.vmem [shape: f32[1,96], index: 2, kind: input, shape index: {}]
  %s3 = inlined_call_operand.hbm [shape: f32[32,96], index: 3, kind: input, shape index: {}]
  %s4 = inlined_call_operand.vmem [shape: f32[1,96], index: 4, kind: input, shape index: {}]
  %s5 = inlined_call_operand.hbm [shape: f32[32,128], index: 5, kind: input, shape index: {}]
  %s6 = inlined_call_operand.vmem [shape: f32[1,128], index: 6, kind: input, shape index: {}]
  %s7 = inlined_call_operand.hbm [shape: f32[8,128], index: 7, kind: output, shape index: {}]
  %s8 = sld [smem:[#allocation0]]
  $region50: #{tpu_custom_call.1} parent=0
    _
  %s10 = ssub.s32 1, %s8
  %s11 = scalar_select 0, %s10, %s8
  $region1: #{tpu_custom_call.1} parent=0
    #allocation2 [shape = 'u8[32768]{0}', space=vmem, size = 0x8000, scoped, tag = 'input window, operand 1, single buffered']
    #allocation3 [shape = 's32[1]{0}', space=sflag, size = 0x4, scoped, tag = 'scoped memory for tpu_custom_call.1']
    #allocation4 [shape = 's32[1]{0}', space=sflag, size = 0x4, scoped, tag = 'scoped memory for tpu_custom_call.1']
    #allocation5 [shape = 'u8[16384]{0}', space=vmem, size = 0x4000, scoped, tag = 'input window, operand 3, single buffered']
    #allocation6 [shape = 's32[1]{0}', space=sflag, size = 0x4, scoped, tag = 'scoped memory for tpu_custom_call.1']
    #allocation7 [shape = 'u8[16384]{0}', space=vmem, size = 0x4000, scoped, tag = 'input window, operand 5, single buffered']
    #allocation8 [shape = 'u8[4096]{0}', space=vmem, size = 0x1000, scoped, tag = 'output window, operand 0, single buffered']
    %12 = vsyncpa [#allocation3], 0
    %13 = vsyncpa [#allocation6], 0
    %14 = vsyncpa [#allocation4], 0
    // Predicated region
    $region2: #{tpu_custom_call.1} parent=1 // pred_check
      _
    $region3: #{tpu_custom_call.1} parent=1 // pred_check_branch
      %16 = sbr.rel (0) target = $region5
    $region4: #{tpu_custom_call.1} parent=1 // pred_region
      _
    $region5: #{tpu_custom_call.1} parent=1 // pred_fallthru
      _
    // Predicated region
    $region6: #{tpu_custom_call.1} parent=1 // pred_check
      _
    $region7: #{tpu_custom_call.1} parent=1 // pred_check_branch
      %18 = sbr.rel (0) target = $region9
    $region8: #{tpu_custom_call.1} parent=1 // pred_region
      %s20 = ssub.s32 1024, 1024
      %21 = vsyncadd [#allocation3], %s20
      %s22 = sshll.u32 [#allocation2], 4
      %s23 = int_to_ptr.vmem [resolvable:$true] %s22
      %28 = dma.hbm_to_vmem [thread:$0]  %s1, 1024, %s23, [#allocation3], 128, 128, 8
    $region9: #{tpu_custom_call.1} parent=1 // pred_fallthru
      _
    // Predicated region
    $region10: #{tpu_custom_call.1} parent=1 // pred_check
      _
    $region11: #{tpu_custom_call.1} parent=1 // pred_check_branch
      %30 = sbr.rel (0) target = $region13
    $region12: #{tpu_custom_call.1} parent=1 // pred_region
      _
    $region13: #{tpu_custom_call.1} parent=1 // pred_fallthru
      _
    // Predicated region
    $region14: #{tpu_custom_call.1} parent=1 // pred_check
      _
    $region15: #{tpu_custom_call.1} parent=1 // pred_check_branch
      %32 = sbr.rel (0) target = $region17
    $region16: #{tpu_custom_call.1} parent=1 // pred_region
      %s34 = ssub.s32 512, 512
      %35 = vsyncadd [#allocation6], %s34
      %s36 = sshll.u32 [#allocation5], 4
      %s37 = int_to_ptr.vmem [resolvable:$true] %s36
      %42 = dma.hbm_to_vmem [thread:$0]  %s3, 512, %s37, [#allocation6], 128, 128, 8
    $region17: #{tpu_custom_call.1} parent=1 // pred_fallthru
      _
    // Predicated region
    $region18: #{tpu_custom_call.1} parent=1 // pred_check
      _
    $region19: #{tpu_custom_call.1} parent=1 // pred_check_branch
      %44 = sbr.rel (0) target = $region21
    $region20: #{tpu_custom_call.1} parent=1 // pred_region
      _
    $region21: #{tpu_custom_call.1} parent=1 // pred_fallthru
      _
    // Predicated region
    $region22: #{tpu_custom_call.1} parent=1 // pred_check
      _
    $region23: #{tpu_custom_call.1} parent=1 // pred_check_branch
      %46 = sbr.rel (0) target = $region25
    $region24: #{tpu_custom_call.1} parent=1 // pred_region
      %s48 = ssub.s32 512, 512
      %49 = vsyncadd [#allocation6], %s48
      %s50 = sshll.u32 [#allocation7], 4
      %s51 = int_to_ptr.vmem [resolvable:$true] %s50
      %56 = dma.hbm_to_vmem [thread:$0]  %s5, 512, %s51, [#allocation6], 128, 128, 8
    $region25: #{tpu_custom_call.1} parent=1 // pred_fallthru
      _
    // Predicated region
    $region26: #{tpu_custom_call.1} parent=1 // pred_check
      _
    $region27: #{tpu_custom_call.1} parent=1 // pred_check_branch
      %58 = sbr.rel (0) target = $region29
    $region28: #{tpu_custom_call.1} parent=1 // pred_region
      _
    $region29: #{tpu_custom_call.1} parent=1 // pred_fallthru
      _
    // Predicated region
    $region30: #{tpu_custom_call.1} parent=1 // pred_check
      _
    $region31: #{tpu_custom_call.1} parent=1 // pred_check_branch
      %60 = sbr.rel (0) target = $region33
    $region32: #{tpu_custom_call.1} parent=1 // pred_region
      %61 = dma.done [#allocation3], 1024
    $region33: #{tpu_custom_call.1} parent=1 // pred_fallthru
      _
    // Predicated region
    $region34: #{tpu_custom_call.1} parent=1 // pred_check
      _
    $region35: #{tpu_custom_call.1} parent=1 // pred_check_branch
      %63 = sbr.rel (0) target = $region37
    $region36: #{tpu_custom_call.1} parent=1 // pred_region
      %64 = dma.done [#allocation6], 512
    $region37: #{tpu_custom_call.1} parent=1 // pred_fallthru
      _
    // Predicated region
    $region38: #{tpu_custom_call.1} parent=1 // pred_check
      _
    $region39: #{tpu_custom_call.1} parent=1 // pred_check_branch
      %66 = sbr.rel (0) target = $region41
    $region40: #{tpu_custom_call.1} parent=1 // pred_region
      %67 = dma.done [#allocation6], 512
    $region41: #{tpu_custom_call.1} parent=1 // pred_fallthru
      _
    %v68 = vld [vmem:[%s0] sm:$0xff]
    %v69 = vlaneseq
    %v70 = vand.u32 %v69, 127
    %71 = vset.pattern.permute.xlu0 0
    %72 = vperm.xlu0 %71, %v68
    %v73 = vpop.permute.xlu0 %72
    %vm74 = vcmp.eq.s32.totalorder %v73, %v70
    %v75 = vsel %vm74, 1, 0
    %v76 = vcvt.s32.f32 %v75
    %v77 = vld [vmem:[#allocation2] sm:$0xff]
    %v78 = vld [vmem:[#allocation2 + $0x8] sm:$0xff]
    %v79 = vld [vmem:[#allocation2 + $0x10] sm:$0xff]
    %v80 = vld [vmem:[#allocation2 + $0x18] sm:$0xff]
    %v81 = vld [vmem:[#allocation2 + $0x20] sm:$0xff]
    %v82 = vld [vmem:[#allocation2 + $0x28] sm:$0xff]
    %v83 = vld [vmem:[#allocation2 + $0x30] sm:$0xff]
    %v84 = vld [vmem:[#allocation2 + $0x38] sm:$0xff]
    %v85 = vld [vmem:[%s2] sm:$0x1]
    %v87 = vlaneseq
    %v88 = vshrl.u32 %v87, 7
    %v89 = vsub.s32 0, %v88
    %v90 = vrot.slane %v85, %v89
    %vm92 = vcmask 523264
    %v94 = vsel %vm92, %v76, 0
    %96 = vmatprep.subr.mxu0 0.0
    %97 = vmatpush1.msra.mxu0 0.0
    %98 = vmatprep.subr.mxu0 0.0
    %99 = vmatpush1.msra.mxu0 0.0
    %100 = vmatprep.subr.mxu0 0.0
    %101 = vmatpush1.msra.mxu0 0.0
    %102 = vmatprep.subr.mxu0 0.0
    %103 = vmatpush1.msra.mxu0 0.0
    %104 = vmatprep.subr.mxu0 0.0
    %105 = vmatpush1.msra.mxu0 0.0
    %106 = vmatprep.subr.mxu0 0.0
    %107 = vmatpush1.msra.mxu0 0.0
    %108 = vmatprep.subr.mxu0 0.0
    %109 = vmatpush1.msra.mxu0 0.0
    %110 = vmatprep.subr.mxu0 0.0
    %111 = vmatpush1.msra.mxu0 0.0
    %112 = vmatprep.subr.mxu0 0.0
    %113 = vmatpush1.msra.mxu0 %v84
    %114 = vmatprep.subr.mxu0 0.0
    %115 = vmatpush1.msra.mxu0 %v83
    %116 = vmatprep.subr.mxu0 0.0
    %117 = vmatpush1.msra.mxu0 %v82
    %118 = vmatprep.subr.mxu0 0.0
    %119 = vmatpush1.msra.mxu0 %v81
    %120 = vmatprep.subr.mxu0 0.0
    %121 = vmatpush1.msra.mxu0 %v80
    %122 = vmatprep.subr.mxu0 0.0
    %123 = vmatpush1.msra.mxu0 %v79
    %124 = vmatprep.subr.mxu0 0.0
    %125 = vmatpush1.msra.mxu0 %v78
    %126 = vmatprep.subr.mxu0 0.0
    %127 = vmatpush1.msra.mxu0 %v77
    %128 = vmatprep.subr.mxu0 0.0
    %129 = vmatpush2.msra.mxu0 0.0
    %130 = vmatprep.subr.mxu0 0.0
    %131 = vmatpush2.msra.mxu0 0.0
    %132 = vmatprep.subr.mxu0 0.0
    %133 = vmatpush2.msra.mxu0 0.0
    %134 = vmatprep.subr.mxu0 0.0
    %135 = vmatpush2.msra.mxu0 0.0
    %136 = vmatprep.subr.mxu0 0.0
    %137 = vmatpush2.msra.mxu0 0.0
    %138 = vmatprep.subr.mxu0 0.0
    %139 = vmatpush2.msra.mxu0 0.0
    %140 = vmatprep.subr.mxu0 0.0
    %141 = vmatpush2.msra.mxu0 0.0
    %142 = vmatprep.subr.mxu0 0.0
    %143 = vmatpush2.msra.mxu0 0.0
    %144 = vmatprep.subr.mxu0 0.0
    %145 = vmatpush2.msra.mxu0 0.0
    %146 = vmatprep.subr.mxu0 0.0
    %147 = vmatpush2.msra.mxu0 0.0
    %148 = vmatprep.subr.mxu0 0.0
    %149 = vmatpush2.msra.mxu0 0.0
    %150 = vmatprep.subr.mxu0 0.0
    %151 = vmatpush2.msra.mxu0 0.0
    %152 = vmatprep.subr.mxu0 0.0
    %153 = vmatpush2.msra.mxu0 0.0
    %154 = vmatprep.subr.mxu0 0.0
    %155 = vmatpush2.msra.mxu0 0.0
    %156 = vmatprep.subr.mxu0 0.0
    %157 = vmatpush2.msra.mxu0 0.0
    %158 = vmatprep.subr.mxu0 0.0
    %159 = vmatpush2.msra.mxu0 0.0
    %160 = vmatprep.mubr.f32.mxu0 0.0
    %161 = vmatmul.mubr.f32.gmra.mxu0 %v94
    %v162 = vpop.f32.mrf.mxu0
    %v163 = vadd.f32 %v90, %v162
    %v164 = vpop.f32.mrf.mxu0
    %165 = vdwg.mxu0
    %v166 = vtanh.pop %v163
    %v167 = vmul.f32 %v166, 0.5
    %v168 = vadd.f32 %v167, 0.5
    %170 = vrot.lane.b32.xlu0 %v166, 64
    %v171 = vpop.permute.xlu0 %170
    %v173 = vmul.f32 %v168, %v171
    %v174 = vtanh.pop %v173
    %176 = vrot.lane.b32.xlu0 %v174, 32
    %v177 = vpop.permute.xlu0 %176
    %v179 = vmul.f32 %v168, %v177
    %v180 = vld [vmem:[#allocation5] sm:$0xff]
    %v181 = vld [vmem:[#allocation5 + $0x8] sm:$0xff]
    %v182 = vld [vmem:[#allocation5 + $0x10] sm:$0xff]
    %v183 = vld [vmem:[#allocation5 + $0x18] sm:$0xff]
    %v184 = vld [vmem:[%s4] sm:$0x1]
    %v186 = vlaneseq
    %v187 = vshrl.u32 %v186, 7
    %v188 = vsub.s32 0, %v187
    %v189 = vrot.slane %v184, %v188
    %192 = vrot.lane.b32.xlu0 %v179, 96
    %v193 = vpop.permute.xlu0 %192
    %vm194 = vcmask 261120
    %v195 = vsel %vm194, %v193, 0
    %197 = vmatprep.subr.mxu0 0.0
    %198 = vmatpush1.msra.mxu0 0.0
    %199 = vmatprep.subr.mxu0 0.0
    %200 = vmatpush1.msra.mxu0 0.0
    %201 = vmatprep.subr.mxu0 0.0
    %202 = vmatpush1.msra.mxu0 0.0
    %203 = vmatprep.subr.mxu0 0.0
    %204 = vmatpush1.msra.mxu0 0.0
    %205 = vmatprep.subr.mxu0 0.0
    %206 = vmatpush1.msra.mxu0 0.0
    %207 = vmatprep.subr.mxu0 0.0
    %208 = vmatpush1.msra.mxu0 0.0
    %209 = vmatprep.subr.mxu0 0.0
    %210 = vmatpush1.msra.mxu0 0.0
    %211 = vmatprep.subr.mxu0 0.0
    %212 = vmatpush1.msra.mxu0 0.0
    %213 = vmatprep.subr.mxu0 0.0
    %214 = vmatpush1.msra.mxu0 0.0
    %215 = vmatprep.subr.mxu0 0.0
    %216 = vmatpush1.msra.mxu0 0.0
    %217 = vmatprep.subr.mxu0 0.0
    %218 = vmatpush1.msra.mxu0 0.0
    %219 = vmatprep.subr.mxu0 0.0
    %220 = vmatpush1.msra.mxu0 0.0
    %221 = vmatprep.subr.mxu0 0.0
    %222 = vmatpush1.msra.mxu0 %v183
    %223 = vmatprep.subr.mxu0 0.0
    %224 = vmatpush1.msra.mxu0 %v182
    %225 = vmatprep.subr.mxu0 0.0
    %226 = vmatpush1.msra.mxu0 %v181
    %227 = vmatprep.subr.mxu0 0.0
    %228 = vmatpush1.msra.mxu0 %v180
    %229 = vmatprep.subr.mxu0 0.0
    %230 = vmatpush2.msra.mxu0 0.0
    %231 = vmatprep.subr.mxu0 0.0
    %232 = vmatpush2.msra.mxu0 0.0
    %233 = vmatprep.subr.mxu0 0.0
    %234 = vmatpush2.msra.mxu0 0.0
    %235 = vmatprep.subr.mxu0 0.0
    %236 = vmatpush2.msra.mxu0 0.0
    %237 = vmatprep.subr.mxu0 0.0
    %238 = vmatpush2.msra.mxu0 0.0
    %239 = vmatprep.subr.mxu0 0.0
    %240 = vmatpush2.msra.mxu0 0.0
    %241 = vmatprep.subr.mxu0 0.0
    %242 = vmatpush2.msra.mxu0 0.0
    %243 = vmatprep.subr.mxu0 0.0
    %244 = vmatpush2.msra.mxu0 0.0
    %245 = vmatprep.subr.mxu0 0.0
    %246 = vmatpush2.msra.mxu0 0.0
    %247 = vmatprep.subr.mxu0 0.0
    %248 = vmatpush2.msra.mxu0 0.0
    %249 = vmatprep.subr.mxu0 0.0
    %250 = vmatpush2.msra.mxu0 0.0
    %251 = vmatprep.subr.mxu0 0.0
    %252 = vmatpush2.msra.mxu0 0.0
    %253 = vmatprep.subr.mxu0 0.0
    %254 = vmatpush2.msra.mxu0 0.0
    %255 = vmatprep.subr.mxu0 0.0
    %256 = vmatpush2.msra.mxu0 0.0
    %257 = vmatprep.subr.mxu0 0.0
    %258 = vmatpush2.msra.mxu0 0.0
    %259 = vmatprep.subr.mxu0 0.0
    %260 = vmatpush2.msra.mxu0 0.0
    %261 = vmatprep.mubr.f32.mxu0 0.0
    %262 = vmatmul.mubr.f32.gmra.mxu0 %v195
    %v263 = vpop.f32.mrf.mxu0
    %v264 = vadd.f32 %v189, %v263
    %v265 = vpop.f32.mrf.mxu0
    %266 = vdwg.mxu0
    %v267 = vtanh.pop %v264
    %v268 = vmul.f32 %v267, 0.5
    %v269 = vadd.f32 %v268, 0.5
    %271 = vrot.lane.b32.xlu0 %v267, 64
    %v272 = vpop.permute.xlu0 %271
    %v274 = vmul.f32 %v269, %v272
    %v275 = vtanh.pop %v274
    %277 = vrot.lane.b32.xlu0 %v275, 32
    %v278 = vpop.permute.xlu0 %277
    %v280 = vmul.f32 %v269, %v278
    %v281 = vld [vmem:[#allocation7] sm:$0xff]
    %v282 = vld [vmem:[#allocation7 + $0x8] sm:$0xff]
    %v283 = vld [vmem:[#allocation7 + $0x10] sm:$0xff]
    %v284 = vld [vmem:[#allocation7 + $0x18] sm:$0xff]
    %v285 = vld [vmem:[%s6] sm:$0x1]
    %v287 = vlaneseq
    %v288 = vshrl.u32 %v287, 7
    %v289 = vsub.s32 0, %v288
    %v290 = vrot.slane %v285, %v289
    %293 = vrot.lane.b32.xlu0 %v280, 96
    %v294 = vpop.permute.xlu0 %293
    %v295 = vsel %vm194, %v294, 0
    %297 = vmatprep.subr.mxu0 0.0
    %298 = vmatpush1.msra.mxu0 0.0
    %299 = vmatprep.subr.mxu0 0.0
    %300 = vmatpush1.msra.mxu0 0.0
    %301 = vmatprep.subr.mxu0 0.0
    %302 = vmatpush1.msra.mxu0 0.0
    %303 = vmatprep.subr.mxu0 0.0
    %304 = vmatpush1.msra.mxu0 0.0
    %305 = vmatprep.subr.mxu0 0.0
    %306 = vmatpush1.msra.mxu0 0.0
    %307 = vmatprep.subr.mxu0 0.0
    %308 = vmatpush1.msra.mxu0 0.0
    %309 = vmatprep.subr.mxu0 0.0
    %310 = vmatpush1.msra.mxu0 0.0
    %311 = vmatprep.subr.mxu0 0.0
    %312 = vmatpush1.msra.mxu0 0.0
    %313 = vmatprep.subr.mxu0 0.0
    %314 = vmatpush1.msra.mxu0 0.0
    %315 = vmatprep.subr.mxu0 0.0
    %316 = vmatpush1.msra.mxu0 0.0
    %317 = vmatprep.subr.mxu0 0.0
    %318 = vmatpush1.msra.mxu0 0.0
    %319 = vmatprep.subr.mxu0 0.0
    %320 = vmatpush1.msra.mxu0 0.0
    %321 = vmatprep.subr.mxu0 0.0
    %322 = vmatpush1.msra.mxu0 %v284
    %323 = vmatprep.subr.mxu0 0.0
    %324 = vmatpush1.msra.mxu0 %v283
    %325 = vmatprep.subr.mxu0 0.0
    %326 = vmatpush1.msra.mxu0 %v282
    %327 = vmatprep.subr.mxu0 0.0
    %328 = vmatpush1.msra.mxu0 %v281
    %329 = vmatprep.subr.mxu0 0.0
    %330 = vmatpush2.msra.mxu0 0.0
    %331 = vmatprep.subr.mxu0 0.0
    %332 = vmatpush2.msra.mxu0 0.0
    %333 = vmatprep.subr.mxu0 0.0
    %334 = vmatpush2.msra.mxu0 0.0
    %335 = vmatprep.subr.mxu0 0.0
    %336 = vmatpush2.msra.mxu0 0.0
    %337 = vmatprep.subr.mxu0 0.0
    %338 = vmatpush2.msra.mxu0 0.0
    %339 = vmatprep.subr.mxu0 0.0
    %340 = vmatpush2.msra.mxu0 0.0
    %341 = vmatprep.subr.mxu0 0.0
    %342 = vmatpush2.msra.mxu0 0.0
    %343 = vmatprep.subr.mxu0 0.0
    %344 = vmatpush2.msra.mxu0 0.0
    %345 = vmatprep.subr.mxu0 0.0
    %346 = vmatpush2.msra.mxu0 0.0
    %347 = vmatprep.subr.mxu0 0.0
    %348 = vmatpush2.msra.mxu0 0.0
    %349 = vmatprep.subr.mxu0 0.0
    %350 = vmatpush2.msra.mxu0 0.0
    %351 = vmatprep.subr.mxu0 0.0
    %352 = vmatpush2.msra.mxu0 0.0
    %353 = vmatprep.subr.mxu0 0.0
    %354 = vmatpush2.msra.mxu0 0.0
    %355 = vmatprep.subr.mxu0 0.0
    %356 = vmatpush2.msra.mxu0 0.0
    %357 = vmatprep.subr.mxu0 0.0
    %358 = vmatpush2.msra.mxu0 0.0
    %359 = vmatprep.subr.mxu0 0.0
    %360 = vmatpush2.msra.mxu0 0.0
    %361 = vmatprep.mubr.f32.mxu0 0.0
    %362 = vmatmul.mubr.f32.gmra.mxu0 %v295
    %v363 = vpop.f32.mrf.mxu0
    %v364 = vadd.f32 %v290, %v363
    %v365 = vpop.f32.mrf.mxu0
    %366 = vdwg.mxu0
    %v367 = vtanh.pop %v364
    %v368 = vmul.f32 %v367, 0.5
    %v369 = vadd.f32 %v368, 0.5
    %370 = vst [vmem:[#allocation8] sm:$0xff] %v369
    // Predicated region
    $region42: #{tpu_custom_call.1} parent=1 // pred_check
      _
    $region43: #{tpu_custom_call.1} parent=1 // pred_check_branch
      %372 = sbr.rel (0) target = $region45
    $region44: #{tpu_custom_call.1} parent=1 // pred_region
      %s374 = ssub.s32 128, 128
      %375 = vsyncadd [#allocation4], %s374
      %s377 = sshll.u32 [#allocation8], 4
      %s378 = int_to_ptr.vmem [resolvable:$true] %s377
      %380 = dma.vmem_to_hbm [thread:$0]  %s378, 128, %s7, [#allocation4]
    $region45: #{tpu_custom_call.1} parent=1 // pred_fallthru
      _
    // Predicated region
    $region46: #{tpu_custom_call.1} parent=1 // pred_check
      _
    $region47: #{tpu_custom_call.1} parent=1 // pred_check_branch
      %382 = sbr.rel (0) target = $region49
    $region48: #{tpu_custom_call.1} parent=1 // pred_region
      %383 = dma.done [#allocation4], 128
    $region49: #{tpu_custom_call.1} parent=1 // pred_fallthru
      _
    %384 = vsyncpa [#allocation3], 1
    %385 = vsyncpa [#allocation6], 1
    %386 = vsyncpa [#allocation4], 1

</llo_original>
